<compile_context>
chip_gen: v7x
topology: tpu7x:2x2x1
jax: 0.10.0
libtpu: 0.0.40
codegen_flags: <defaults>
</compile_context>

<pallas_src>
import jax
import jax.numpy as jnp
from jax.experimental import pallas as pl
from jax.experimental.pallas import tpu as pltpu

# ---------------------------------------------------------------------------
# Model dimensions (from the PyTorch module)
# ---------------------------------------------------------------------------
F_R50 = 2048          # resnet50 feature width (fc = Identity)
F_R101 = 2048         # resnet101 feature width
F_EFF = 1280          # efficientnet-b0 feature width
F_CAT = F_R50 + F_R101 + F_EFF   # 5376
HIDDEN = 512
NUM_CLASSES = 7
OUT_PAD = 128         # lane-dense padded classifier output width (>= 7)

_HIGHEST = jax.lax.Precision.HIGHEST


def _round_up(n, m):
    return ((n + m - 1) // m) * m


# ---------------------------------------------------------------------------
# Fused Pallas kernel: pool -> folded Linear -> ReLU -> Linear (lane-padded)
# ---------------------------------------------------------------------------
def ensemble_kernel(x_ref, wf_ref, bf_ref, w2_ref, b2_ref, out_ref):
    # x_ref: (TB, C, H*W) float32 — one batch tile.
    # Global average pool over the spatial dim (backbone stand-in pooling).
    pooled = jnp.mean(x_ref[...], axis=-1)                               # (TB, C)

    # Folded (backbone projections + concat + Linear(5376, 512)) == Linear(C, 512)
    h = jnp.dot(pooled, wf_ref[...],
                preferred_element_type=jnp.float32) + bf_ref[...]        # (TB, 512)
    h = jnp.maximum(h, 0.0)                                              # ReLU
    # Dropout(0.5): eval mode -> identity.

    # Linear(512, 7), zero-padded to 128 output lanes for unmasked stores.
    out_ref[...] = jnp.dot(h, w2_ref[...],
                           preferred_element_type=jnp.float32) + b2_ref[...]  # (TB, 128)


def ensemble_net(x_nchw, params):
    """x_nchw: (B, C, H, W) float32; params: dict of weights."""
    B, C, H, W = x_nchw.shape
    HW = H * W
    x = x_nchw.reshape(B, C, HW)

    # ---- wrapper-side algebraic folding (done once, outside the kernel) ----
    # concat order (f50, f101, feff) matches the row layout of w1.
    w_cat = jnp.concatenate([params["w50"], params["w101"], params["weff"]], axis=1)  # (C, 5376)
    b_cat = jnp.concatenate([params["b50"], params["b101"], params["beff"]], axis=1)  # (1, 5376)
    w_fold = jnp.dot(w_cat, params["w1"], precision=_HIGHEST)                         # (C, 512)
    b_fold = jnp.dot(b_cat, params["w1"], precision=_HIGHEST) + params["b1"]          # (1, 512)

    # Lane-dense padded final layer (7 -> 128 output lanes, zero pad).
    w2p = jnp.zeros((HIDDEN, OUT_PAD), jnp.float32).at[:, :NUM_CLASSES].set(params["w2"])
    b2p = jnp.zeros((1, OUT_PAD), jnp.float32).at[:, :NUM_CLASSES].set(params["b2"])

    # ---- batch tiling: sublane-aligned tiles, pad B up ----
    TB = min(128, _round_up(B, 8))
    B_pad = _round_up(B, TB)
    if B_pad != B:
        x = jnp.pad(x, ((0, B_pad - B), (0, 0), (0, 0)))

    grid = (B_pad // TB,)
    out = pl.pallas_call(
        ensemble_kernel,
        out_shape=jax.ShapeDtypeStruct((B_pad, OUT_PAD), jnp.float32),
        grid=grid,
        in_specs=[
            pl.BlockSpec((TB, C, HW), lambda i: (i, 0, 0)),      # x: tiled over batch
            pl.BlockSpec((C, HIDDEN), lambda i: (0, 0)),         # W_fold: resident
            pl.BlockSpec((1, HIDDEN), lambda i: (0, 0)),         # b_fold: resident
            pl.BlockSpec((HIDDEN, OUT_PAD), lambda i: (0, 0)),   # w2 (padded): resident
            pl.BlockSpec((1, OUT_PAD), lambda i: (0, 0)),        # b2 (padded): resident
        ],
        out_specs=pl.BlockSpec((TB, OUT_PAD), lambda i: (i, 0)),
        compiler_params=pltpu.CompilerParams(
            # Batch axis is independent -> shard across v7x's 2 TensorCores
            # (no-op on single-TC v5e/v6e).
            dimension_semantics=("parallel",),
            # Accurate, below v7x's 64 MiB physical VMEM; actual use < 1 MiB.
            vmem_limit_bytes=32 << 20,
        ),
    )(x, w_fold, b_fold, w2p, b2p)

    return out[:B, :NUM_CLASSES]


# ---------------------------------------------------------------------------
# Deterministic parameter init (synthetic weights, not a checkpoint load)
# ---------------------------------------------------------------------------
def init_params(key, in_channels):
    ks = jax.random.split(key, 10)
    s = 0.02
    return {
        # backbone-stub projections (pooled C channels -> feature width)
        "w50":  jax.random.normal(ks[0], (in_channels, F_R50), jnp.float32) * s,
        "b50":  jax.random.normal(ks[1], (1, F_R50), jnp.float32) * s,
        "w101": jax.random.normal(ks[2], (in_channels, F_R101), jnp.float32) * s,
        "b101": jax.random.normal(ks[3], (1, F_R101), jnp.float32) * s,
        "weff": jax.random.normal(ks[4], (in_channels, F_EFF), jnp.float32) * s,
        "beff": jax.random.normal(ks[5], (1, F_EFF), jnp.float32) * s,
        # classifier head
        "w1": jax.random.normal(ks[6], (F_CAT, HIDDEN), jnp.float32) * s,
        "b1": jax.random.normal(ks[7], (1, HIDDEN), jnp.float32) * s,
        "w2": jax.random.normal(ks[8], (HIDDEN, NUM_CLASSES), jnp.float32) * s,
        "b2": jax.random.normal(ks[9], (1, NUM_CLASSES), jnp.float32) * s,
    }


def reference_forward(x_nchw, p):
    """Pure-JAX reference of the ORIGINAL (unfolded) math, high precision."""
    B, C, H, W = x_nchw.shape
    pooled = jnp.mean(x_nchw.reshape(B, C, H * W), axis=-1)
    f50 = jnp.dot(pooled, p["w50"], precision=_HIGHEST) + p["b50"]
    f101 = jnp.dot(pooled, p["w101"], precision=_HIGHEST) + p["b101"]
    feff = jnp.dot(pooled, p["weff"], precision=_HIGHEST) + p["beff"]
    feats = jnp.concatenate([f50, f101, feff], axis=1)
    h = jnp.maximum(jnp.dot(feats, p["w1"], precision=_HIGHEST) + p["b1"], 0.0)
    return jnp.dot(h, p["w2"], precision=_HIGHEST) + p["b2"]


if __name__ == "__main__":
    key = jax.random.PRNGKey(0)
    k_x, k_p = jax.random.split(key)

    # Small image batch consistent with the module's NCHW conv input.
    x = jax.random.normal(k_x, (2, 3, 16, 16), jnp.float32)
    params = init_params(k_p, in_channels=3)

    out = ensemble_net(x, params)
    out = jax.block_until_ready(out)

    ref = jax.block_until_ready(reference_forward(x, params))
    assert out.shape == (2, NUM_CLASSES)
    # Folding + MXU default (bf16-input) rounding vs. the HIGHEST-precision
    # unfolded reference changes associativity slightly; keep a tolerance that
    # still catches structural bugs (output magnitudes are O(1e-2)).
    assert jnp.allclose(out, ref, atol=1e-3, rtol=1e-2), "mismatch vs reference"

    print("KERNEL_OK")
</pallas_src>

<mosaic_0001>
module attributes {stable_mosaic.version = 11 : i64} {
  func.func @ensemble_kernel(%arg0: i32, %arg1: memref<8x3x256xf32, #tpu.memory_space<vmem>>, %arg2: memref<3x512xf32, #tpu.memory_space<vmem>>, %arg3: memref<1x512xf32, #tpu.memory_space<vmem>>, %arg4: memref<512x128xf32, #tpu.memory_space<vmem>>, %arg5: memref<1x128xf32, #tpu.memory_space<vmem>>, %arg6: memref<8x128xf32, #tpu.memory_space<vmem>>) attributes {dimension_semantics = [#tpu.dimension_semantics<parallel>], iteration_bounds = array<i64: 1>, scalar_prefetch = 0 : i64, scratch_operands = 0 : i64, tpu.core_type = #tpu.core_type<tc>, window_params = [{transform_indices = @transform_0, window_bounds = array<i64: 8, 3, 256>}, {pipeline_mode = #tpu.pipeline_mode<synchronous>, transform_indices = @transform_1, window_bounds = array<i64: 3, 512>}, {pipeline_mode = #tpu.pipeline_mode<synchronous>, transform_indices = @transform_2, window_bounds = array<i64: 1, 512>}, {pipeline_mode = #tpu.pipeline_mode<synchronous>, transform_indices = @transform_3, window_bounds = array<i64: 512, 128>}, {pipeline_mode = #tpu.pipeline_mode<synchronous>, transform_indices = @transform_4, window_bounds = array<i64: 1, 128>}, {transform_indices = @transform_5, window_bounds = array<i64: 8, 128>}]} {
    %c0 = arith.constant 0 : index
    %c0_0 = arith.constant 0 : index
    %c0_1 = arith.constant 0 : index
    %0 = vector.load %arg1[%c0, %c0_0, %c0_1] : memref<8x3x256xf32, #tpu.memory_space<vmem>>, vector<8x3x256xf32>
    %cst = arith.constant dense<0.000000e+00> : vector<8x3xf32>
    %1 = vector.multi_reduction <add>, %0, %cst [2] : vector<8x3x256xf32> to vector<8x3xf32>
    %cst_2 = arith.constant 2.560000e+02 : f32
    %2 = vector.broadcast %cst_2 : f32 to vector<8x3xf32>
    %3 = arith.divf %1, %2 : vector<8x3xf32>
    %c0_3 = arith.constant 0 : index
    %c0_4 = arith.constant 0 : index
    %4 = vector.load %arg2[%c0_3, %c0_4] : memref<3x512xf32, #tpu.memory_space<vmem>>, vector<3x512xf32>
    %cst_5 = arith.constant dense<0.000000e+00> : vector<8x512xf32>
    %5 = tpu.matmul %3, %4, %cst_5 {dimension_numbers = #tpu.dot_dimension_numbers<[1], [0], [0], [1], [0, 0, 1, 1], [], []>} : vector<8x3xf32>, vector<3x512xf32>, vector<8x512xf32> -> vector<8x512xf32>
    %c0_6 = arith.constant 0 : index
    %c0_7 = arith.constant 0 : index
    %6 = vector.load %arg3[%c0_6, %c0_7] : memref<1x512xf32, #tpu.memory_space<vmem>>, vector<1x512xf32>
    %7 = vector.broadcast %6 : vector<1x512xf32> to vector<8x512xf32>
    %8 = arith.addf %5, %7 : vector<8x512xf32>
    %cst_8 = arith.constant 0.000000e+00 : f32
    %9 = vector.broadcast %cst_8 : f32 to vector<8x512xf32>
    %10 = arith.maximumf %8, %9 : vector<8x512xf32>
    %c0_9 = arith.constant 0 : index
    %c0_10 = arith.constant 0 : index
    %11 = vector.load %arg4[%c0_9, %c0_10] : memref<512x128xf32, #tpu.memory_space<vmem>>, vector<512x128xf32>
    %cst_11 = arith.constant dense<0.000000e+00> : vector<8x128xf32>
    %12 = tpu.matmul %10, %11, %cst_11 {dimension_numbers = #tpu.dot_dimension_numbers<[1], [0], [0], [1], [0, 0, 1, 1], [], []>} : vector<8x512xf32>, vector<512x128xf32>, vector<8x128xf32> -> vector<8x128xf32>
    %c0_12 = arith.constant 0 : index
    %c0_13 = arith.constant 0 : index
    %13 = vector.load %arg5[%c0_12, %c0_13] : memref<1x128xf32, #tpu.memory_space<vmem>>, vector<1x128xf32>
    %14 = vector.broadcast %13 : vector<1x128xf32> to vector<8x128xf32>
    %15 = arith.addf %12, %14 : vector<8x128xf32>
    %c0_14 = arith.constant 0 : index
    %c0_15 = arith.constant 0 : index
    %16 = vector.load %arg6[%c0_14, %c0_15] : memref<8x128xf32, #tpu.memory_space<vmem>>, vector<8x128xf32>
    tpu.vector_store %arg6[%c0_14, %c0_15], %15 {strides = array<i32>} : memref<8x128xf32, #tpu.memory_space<vmem>>, vector<8x128xf32>,
    return
  }
  func.func @transform_0(%arg0: i32) -> (i32, i32, i32) {
    %c0_i32 = arith.constant 0 : i32
    %c0_i32_0 = arith.constant 0 : i32
    %c0_i32_1 = arith.constant 0 : i32
    return %arg0, %c0_i32, %c0_i32_0 : i32, i32, i32
  }
  func.func @transform_1(%arg0: i32) -> (i32, i32) {
    %c0_i32 = arith.constant 0 : i32
    %c0_i32_0 = arith.constant 0 : i32
    %c0_i32_1 = arith.constant 0 : i32
    return %c0_i32, %c0_i32_0 : i32, i32
  }
  func.func @transform_2(%arg0: i32) -> (i32, i32) {
    %c0_i32 = arith.constant 0 : i32
    %c0_i32_0 = arith.constant 0 : i32
    %c0_i32_1 = arith.constant 0 : i32
    return %c0_i32, %c0_i32_0 : i32, i32
  }
  func.func @transform_3(%arg0: i32) -> (i32, i32) {
    %c0_i32 = arith.constant 0 : i32
    %c0_i32_0 = arith.constant 0 : i32
    %c0_i32_1 = arith.constant 0 : i32
    return %c0_i32, %c0_i32_0 : i32, i32
  }
  func.func @transform_4(%arg0: i32) -> (i32, i32) {
    %c0_i32 = arith.constant 0 : i32
    %c0_i32_0 = arith.constant 0 : i32
    %c0_i32_1 = arith.constant 0 : i32
    return %c0_i32, %c0_i32_0 : i32, i32
  }
  func.func @transform_5(%arg0: i32) -> (i32, i32) {
    %c0_i32 = arith.constant 0 : i32
    %c0_i32_0 = arith.constant 0 : i32
    return %arg0, %c0_i32 : i32, i32
  }
}

</mosaic_0001>

<llo_original>
// kernel: tpu_custom_call.1
$region0: #{tpu_custom_call.1}
  #allocation0 [shape = 'u32[]', space=smem, size = 0x4, offset = 0x4, fixed_abs, tag = 'smem constant byte address 0x4 - core index']
  #allocation1 [shape = 'u32[144,128]{1,0:T(1,128)}', space=vmem, size = 0x12000, scoped, tag = 'internal scratch']
  %s0 = inlined_call_operand.vmem [shape: f32[8,3,256], index: 0, kind: input, shape index: {}]
  %s1 = inlined_call_operand.vmem [shape: f32[3,512], index: 1, kind: input, shape index: {}]
  %s2 = inlined_call_operand.vmem [shape: f32[1,512], index: 2, kind: input, shape index: {}]
  %s3 = inlined_call_operand.hbm [shape: f32[512,128], index: 3, kind: input, shape index: {}]
  %s4 = inlined_call_operand.vmem [shape: f32[1,128], index: 4, kind: input, shape index: {}]
  %s5 = inlined_call_operand.hbm [shape: f32[8,128], index: 5, kind: output, shape index: {}]
  %s6 = sld [smem:[#allocation0]]
  $region34: #{tpu_custom_call.1} parent=0
    _
  %s8 = ssub.s32 1, %s6
  %s9 = scalar_select 0, %s8, %s6
  $region1: #{tpu_custom_call.1} parent=0
    #allocation2 [shape = 'u8[262144]{0}', space=vmem, size = 0x40000, scoped, tag = 'input window, operand 3, single buffered']
    #allocation3 [shape = 's32[1]{0}', space=sflag, size = 0x4, scoped, tag = 'scoped memory for tpu_custom_call.1']
    #allocation4 [shape = 's32[1]{0}', space=sflag, size = 0x4, scoped, tag = 'scoped memory for tpu_custom_call.1']
    #allocation5 [shape = 'u8[4096]{0}', space=vmem, size = 0x1000, scoped, tag = 'output window, operand 0, single buffered']
    %10 = vsyncpa [#allocation3], 0
    %11 = vsyncpa [#allocation4], 0
    // Predicated region
    $region2: #{tpu_custom_call.1} parent=1 // pred_check
      _
    $region3: #{tpu_custom_call.1} parent=1 // pred_check_branch
      %13 = sbr.rel (0) target = $region5
    $region4: #{tpu_custom_call.1} parent=1 // pred_region
      _
    $region5: #{tpu_custom_call.1} parent=1 // pred_fallthru
      _
    // Predicated region
    $region6: #{tpu_custom_call.1} parent=1 // pred_check
      _
    $region7: #{tpu_custom_call.1} parent=1 // pred_check_branch
      %15 = sbr.rel (0) target = $region9
    $region8: #{tpu_custom_call.1} parent=1 // pred_region
      _
    $region9: #{tpu_custom_call.1} parent=1 // pred_fallthru
      _
    // Predicated region
    $region10: #{tpu_custom_call.1} parent=1 // pred_check
      _
    $region11: #{tpu_custom_call.1} parent=1 // pred_check_branch
      %17 = sbr.rel (0) target = $region13
    $region12: #{tpu_custom_call.1} parent=1 // pred_region
      _
    $region13: #{tpu_custom_call.1} parent=1 // pred_fallthru
      _
    // Predicated region
    $region14: #{tpu_custom_call.1} parent=1 // pred_check
      _
    $region15: #{tpu_custom_call.1} parent=1 // pred_check_branch
      %19 = sbr.rel (0) target = $region17
    $region16: #{tpu_custom_call.1} parent=1 // pred_region
      %s21 = ssub.s32 8192, 8192
      %22 = vsyncadd [#allocation3], %s21
      %s23 = sshll.u32 [#allocation2], 4
      %s24 = int_to_ptr.vmem [resolvable:$true] %s23
      %29 = dma.hbm_to_vmem [thread:$0]  %s3, 8192, %s24, [#allocation3], 128, 128, 8
    $region17: #{tpu_custom_call.1} parent=1 // pred_fallthru
      _
    // Predicated region
    $region18: #{tpu_custom_call.1} parent=1 // pred_check
      _
    $region19: #{tpu_custom_call.1} parent=1 // pred_check_branch
      %31 = sbr.rel (0) target = $region21
    $region20: #{tpu_custom_call.1} parent=1 // pred_region
      _
    $region21: #{tpu_custom_call.1} parent=1 // pred_fallthru
      _
    // Predicated region
    $region22: #{tpu_custom_call.1} parent=1 // pred_check
      _
    $region23: #{tpu_custom_call.1} parent=1 // pred_check_branch
      %33 = sbr.rel (0) target = $region25
    $region24: #{tpu_custom_call.1} parent=1 // pred_region
      %34 = dma.done [#allocation3], 8192
    $region25: #{tpu_custom_call.1} parent=1 // pred_fallthru
      _
    %v35 = vld [vmem:[%s0] sm:$0x77]
    %v36 = vld [vmem:[%s0 + $0x8] sm:$0x77]
    %v37 = vld [vmem:[%s0 + $0x10] sm:$0x77]
    %v38 = vld [vmem:[%s0 + $0x18] sm:$0x77]
    %v39 = vld [vmem:[%s0 + $0x20] sm:$0x77]
    %v40 = vld [vmem:[%s0 + $0x28] sm:$0x77]
    %v41 = vld [vmem:[%s0 + $0x30] sm:$0x77]
    %v42 = vld [vmem:[%s0 + $0x38] sm:$0x77]
    %v51 = vcombine.high %v35, %v35
    %v52 = vcombine.high %v36, %v36
    %v53 = vcombine.high %v37, %v37
    %v54 = vcombine.high %v38, %v38
    %v55 = vcombine.high %v39, %v39
    %v56 = vcombine.high %v40, %v40
    %v57 = vcombine.high %v41, %v41
    %v58 = vcombine.high %v42, %v42
    %vm67 = vcmask 1042432
    %v68 = vsel %vm67, %v35, 0.0
    %v69 = vsel %vm67, %v51, 0.0
    %v70 = vadd.f32 %v68, %v69
    %71 = vadd.xlane.f32.xlu0 %v70
    %v72 = vpop.xlane.xlu0 %71
    %v73 = vsel %vm67, %v36, 0.0
    %v74 = vsel %vm67, %v52, 0.0
    %v75 = vadd.f32 %v73, %v74
    %76 = vadd.xlane.f32.xlu0 %v75
    %v77 = vpop.xlane.xlu0 %76
    %v78 = vsel %vm67, %v37, 0.0
    %v79 = vsel %vm67, %v53, 0.0
    %v80 = vadd.f32 %v78, %v79
    %81 = vadd.xlane.f32.xlu0 %v80
    %v82 = vpop.xlane.xlu0 %81
    %v83 = vsel %vm67, %v38, 0.0
    %v84 = vsel %vm67, %v54, 0.0
    %v85 = vadd.f32 %v83, %v84
    %86 = vadd.xlane.f32.xlu0 %v85
    %v87 = vpop.xlane.xlu0 %86
    %v88 = vsel %vm67, %v39, 0.0
    %v89 = vsel %vm67, %v55, 0.0
    %v90 = vadd.f32 %v88, %v89
    %91 = vadd.xlane.f32.xlu0 %v90
    %v92 = vpop.xlane.xlu0 %91
    %v93 = vsel %vm67, %v40, 0.0
    %v94 = vsel %vm67, %v56, 0.0
    %v95 = vadd.f32 %v93, %v94
    %96 = vadd.xlane.f32.xlu0 %v95
    %v97 = vpop.xlane.xlu0 %96
    %v98 = vsel %vm67, %v41, 0.0
    %v99 = vsel %vm67, %v57, 0.0
    %v100 = vadd.f32 %v98, %v99
    %101 = vadd.xlane.f32.xlu0 %v100
    %v102 = vpop.xlane.xlu0 %101
    %v103 = vsel %vm67, %v42, 0.0
    %v104 = vsel %vm67, %v58, 0.0
    %v105 = vadd.f32 %v103, %v104
    %106 = vadd.xlane.f32.xlu0 %v105
    %v107 = vpop.xlane.xlu0 %106
    %v108 = vrcp.pop 256.0
    %v109 = vmul.f32 %v72, %v108
    %v110 = vmul.f32 %v77, %v108
    %v111 = vmul.f32 %v82, %v108
    %v112 = vmul.f32 %v87, %v108
    %v113 = vmul.f32 %v92, %v108
    %v114 = vmul.f32 %v97, %v108
    %v115 = vmul.f32 %v102, %v108
    %v116 = vmul.f32 %v107, %v108
    %v117 = vld [vmem:[%s1] sm:$0x77]
    %v118 = vld [vmem:[%s1 + $0x8] sm:$0x77]
    %v119 = vld [vmem:[%s2] sm:$0xf]
    %v121 = vlaneseq
    %v122 = vshrl.u32 %v121, 7
    %v123 = vsub.s32 0, %v122
    %v124 = vrot.slane %v119, %v123
    %v125 = vlaneseq
    %v126 = vshrl.u32 %v125, 7
    %v127 = vsub.s32 1, %v126
    %v128 = vrot.slane %v119, %v127
    %v129 = vlaneseq
    %v130 = vshrl.u32 %v129, 7
    %v131 = vsub.s32 2, %v130
    %v132 = vrot.slane %v119, %v131
    %v133 = vlaneseq
    %v134 = vshrl.u32 %v133, 7
    %v135 = vsub.s32 3, %v134
    %v136 = vrot.slane %v119, %v135
    %v149 = vlaneseq
    %v150 = vand.u32 %v149, 127
    %v151 = vlaneseq
    %v152 = vshrl.u32 %v151, 7
    %v153 = vsub.s32 %v150, %v152
    %v154 = vrot.slane %v109, %v153
    %v155 = vlaneseq
    %v156 = vshrl.u32 %v155, 7
    %v157 = vsub.s32 %v150, %v156
    %v158 = vrot.slane %v110, %v157
    %v159 = vlaneseq
    %v160 = vshrl.u32 %v159, 7
    %v161 = vsub.s32 %v150, %v160
    %v162 = vrot.slane %v111, %v161
    %v163 = vlaneseq
    %v164 = vshrl.u32 %v163, 7
    %v165 = vsub.s32 %v150, %v164
    %v166 = vrot.slane %v112, %v165
    %v167 = vlaneseq
    %v168 = vshrl.u32 %v167, 7
    %v169 = vsub.s32 %v150, %v168
    %v170 = vrot.slane %v113, %v169
    %v171 = vlaneseq
    %v172 = vshrl.u32 %v171, 7
    %v173 = vsub.s32 %v150, %v172
    %v174 = vrot.slane %v114, %v173
    %v175 = vlaneseq
    %v176 = vshrl.u32 %v175, 7
    %v177 = vsub.s32 %v150, %v176
    %v178 = vrot.slane %v115, %v177
    %v179 = vlaneseq
    %v180 = vshrl.u32 %v179, 7
    %v181 = vsub.s32 %v150, %v180
    %v182 = vrot.slane %v116, %v181
    %vm183 = vcmask 1041409
    %v184 = vsel %vm183, %v158, %v154
    %vm185 = vcmask 1042434
    %v186 = vsel %vm185, %v162, %v184
    %vm187 = vcmask 1043459
    %v188 = vsel %vm187, %v166, %v186
    %vm189 = vcmask 1044484
    %v190 = vsel %vm189, %v170, %v188
    %vm191 = vcmask 1045509
    %v192 = vsel %vm191, %v174, %v190
    %vm193 = vcmask 1046534
    %v194 = vsel %vm193, %v178, %v192
    %vm195 = vcmask 1047559
    %v196 = vsel %vm195, %v182, %v194
    %v199 = vcombine.high %v117, %v117
    %v200 = vcombine.high %v118, %v118
    %vm201 = vcmask 23552
    %v202 = vsel %vm201, %v196, 0
    %v204 = vsel %vm67, %v117, 0
    %v206 = vsel %vm67, %v199, 0
    %v208 = vsel %vm67, %v118, 0
    %v210 = vsel %vm67, %v200, 0
    %212 = vmatprep.subr.mxu0 %v206
    %213 = vmatpush1.msra.mxu0 %v204
    %214 = vmatprep.subr.mxu0 0.0
    %215 = vmatpush1.msra.mxu0 0.0
    %216 = vmatprep.subr.mxu0 0.0
    %217 = vmatpush1.msra.mxu0 0.0
    %218 = vmatprep.subr.mxu0 0.0
    %219 = vmatpush1.msra.mxu0 0.0
    %220 = vmatprep.subr.mxu0 0.0
    %221 = vmatpush1.msra.mxu0 0.0
    %222 = vmatprep.subr.mxu0 0.0
    %223 = vmatpush1.msra.mxu0 0.0
    %224 = vmatprep.subr.mxu0 0.0
    %225 = vmatpush1.msra.mxu0 0.0
    %226 = vmatprep.subr.mxu0 0.0
    %227 = vmatpush1.msra.mxu0 0.0
    %228 = vmatprep.subr.mxu0 0.0
    %229 = vmatpush1.msra.mxu0 0.0
    %230 = vmatprep.subr.mxu0 0.0
    %231 = vmatpush1.msra.mxu0 0.0
    %232 = vmatprep.subr.mxu0 0.0
    %233 = vmatpush1.msra.mxu0 0.0
    %234 = vmatprep.subr.mxu0 0.0
    %235 = vmatpush1.msra.mxu0 0.0
    %236 = vmatprep.subr.mxu0 0.0
    %237 = vmatpush1.msra.mxu0 0.0
    %238 = vmatprep.subr.mxu0 0.0
    %239 = vmatpush1.msra.mxu0 0.0
    %240 = vmatprep.subr.mxu0 0.0
    %241 = vmatpush1.msra.mxu0 0.0
    %242 = vmatprep.subr.mxu0 0.0
    %243 = vmatpush1.msra.mxu0 0.0
    %244 = vmatprep.subr.mxu0 0.0
    %245 = vmatpush1.msra.mxu0 0.0
    %246 = vmatprep.subr.mxu0 0.0
    %247 = vmatpush1.msra.mxu0 0.0
    %248 = vmatprep.subr.mxu0 0.0
    %249 = vmatpush1.msra.mxu0 0.0
    %250 = vmatprep.subr.mxu0 0.0
    %251 = vmatpush1.msra.mxu0 0.0
    %252 = vmatprep.subr.mxu0 0.0
    %253 = vmatpush1.msra.mxu0 0.0
    %254 = vmatprep.subr.mxu0 0.0
    %255 = vmatpush1.msra.mxu0 0.0
    %256 = vmatprep.subr.mxu0 0.0
    %257 = vmatpush1.msra.mxu0 0.0
    %258 = vmatprep.subr.mxu0 0.0
    %259 = vmatpush1.msra.mxu0 0.0
    %260 = vmatprep.subr.mxu0 0.0
    %261 = vmatpush1.msra.mxu0 0.0
    %262 = vmatprep.subr.mxu0 0.0
    %263 = vmatpush1.msra.mxu0 0.0
    %264 = vmatprep.subr.mxu0 0.0
    %265 = vmatpush1.msra.mxu0 0.0
    %266 = vmatprep.subr.mxu0 0.0
    %267 = vmatpush1.msra.mxu0 0.0
    %268 = vmatprep.subr.mxu0 0.0
    %269 = vmatpush1.msra.mxu0 0.0
    %270 = vmatprep.subr.mxu0 0.0
    %271 = vmatpush1.msra.mxu0 0.0
    %272 = vmatprep.subr.mxu0 0.0
    %273 = vmatpush1.msra.mxu0 0.0
    %274 = vmatprep.subr.mxu0 0.0
    %275 = vmatpush1.msra.mxu0 0.0
    %276 = vmatprep.mubr.f32.mxu0 0.0
    %277 = vmatmul.mubr.f32.gmra.mrb[0].mxu0 %v202
    %v278 = vpop.f32.mrb[0].mxu0
    %v279 = vadd.f32 %v124, %v278
    %v280 = vpop.f32.mrb[0].mxu0
    %v281 = vadd.f32 %v128, %v280
    %282 = vdwg.mxu0
    %283 = vmatprep.subr.mxu0 %v210
    %284 = vmatpush1.msra.mxu0 %v208
    %285 = vmatprep.subr.mxu0 0.0
    %286 = vmatpush1.msra.mxu0 0.0
    %287 = vmatprep.subr.mxu0 0.0
    %288 = vmatpush1.msra.mxu0 0.0
    %289 = vmatprep.subr.mxu0 0.0
    %290 = vmatpush1.msra.mxu0 0.0
    %291 = vmatprep.subr.mxu0 0.0
    %292 = vmatpush1.msra.mxu0 0.0
    %293 = vmatprep.subr.mxu0 0.0
    %294 = vmatpush1.msra.mxu0 0.0
    %295 = vmatprep.subr.mxu0 0.0
    %296 = vmatpush1.msra.mxu0 0.0
    %297 = vmatprep.subr.mxu0 0.0
    %298 = vmatpush1.msra.mxu0 0.0
    %299 = vmatprep.subr.mxu0 0.0
    %300 = vmatpush1.msra.mxu0 0.0
    %301 = vmatprep.subr.mxu0 0.0
    %302 = vmatpush1.msra.mxu0 0.0
    %303 = vmatprep.subr.mxu0 0.0
    %304 = vmatpush1.msra.mxu0 0.0
    %305 = vmatprep.subr.mxu0 0.0
    %306 = vmatpush1.msra.mxu0 0.0
    %307 = vmatprep.subr.mxu0 0.0
    %308 = vmatpush1.msra.mxu0 0.0
    %309 = vmatprep.subr.mxu0 0.0
    %310 = vmatpush1.msra.mxu0 0.0
    %311 = vmatprep.subr.mxu0 0.0
    %312 = vmatpush1.msra.mxu0 0.0
    %313 = vmatprep.subr.mxu0 0.0
    %314 = vmatpush1.msra.mxu0 0.0
    %315 = vmatprep.subr.mxu0 0.0
    %316 = vmatpush1.msra.mxu0 0.0
    %317 = vmatprep.subr.mxu0 0.0
    %318 = vmatpush1.msra.mxu0 0.0
    %319 = vmatprep.subr.mxu0 0.0
    %320 = vmatpush1.msra.mxu0 0.0
    %321 = vmatprep.subr.mxu0 0.0
    %322 = vmatpush1.msra.mxu0 0.0
    %323 = vmatprep.subr.mxu0 0.0
    %324 = vmatpush1.msra.mxu0 0.0
    %325 = vmatprep.subr.mxu0 0.0
    %326 = vmatpush1.msra.mxu0 0.0
    %327 = vmatprep.subr.mxu0 0.0
    %328 = vmatpush1.msra.mxu0 0.0
    %329 = vmatprep.subr.mxu0 0.0
    %330 = vmatpush1.msra.mxu0 0.0
    %331 = vmatprep.subr.mxu0 0.0
    %332 = vmatpush1.msra.mxu0 0.0
    %333 = vmatprep.subr.mxu0 0.0
    %334 = vmatpush1.msra.mxu0 0.0
    %335 = vmatprep.subr.mxu0 0.0
    %336 = vmatpush1.msra.mxu0 0.0
    %337 = vmatprep.subr.mxu0 0.0
    %338 = vmatpush1.msra.mxu0 0.0
    %339 = vmatprep.subr.mxu0 0.0
    %340 = vmatpush1.msra.mxu0 0.0
    %341 = vmatprep.subr.mxu0 0.0
    %342 = vmatpush1.msra.mxu0 0.0
    %343 = vmatprep.subr.mxu0 0.0
    %344 = vmatpush1.msra.mxu0 0.0
    %345 = vmatprep.subr.mxu0 0.0
    %346 = vmatpush1.msra.mxu0 0.0
    %347 = vmatprep.mubr.f32.mxu0 0.0
    %348 = vmatmul.mubr.f32.gmra.mrb[0].mxu0 %v202
    %v349 = vpop.f32.mrb[0].mxu0
    %v350 = vadd.f32 %v132, %v349
    %v351 = vpop.f32.mrb[0].mxu0
    %v352 = vadd.f32 %v136, %v351
    %353 = vdwg.mxu0
    %v354 = vmax.f32 %v279, 0.0
    %v355 = vmax.f32 %v281, 0.0
    %v356 = vmax.f32 %v350, 0.0
    %v357 = vmax.f32 %v352, 0.0
    %v358 = vld [vmem:[#allocation2] sm:$0xff]
    %v359 = vld [vmem:[#allocation2 + $0x8] sm:$0xff]
    %v360 = vld [vmem:[#allocation2 + $0x10] sm:$0xff]
    %v361 = vld [vmem:[#allocation2 + $0x18] sm:$0xff]
    %v362 = vld [vmem:[#allocation2 + $0x20] sm:$0xff]
    %v363 = vld [vmem:[#allocation2 + $0x28] sm:$0xff]
    %v364 = vld [vmem:[#allocation2 + $0x30] sm:$0xff]
    %v365 = vld [vmem:[#allocation2 + $0x38] sm:$0xff]
    %v366 = vld [vmem:[#allocation2 + $0x40] sm:$0xff]
    %v367 = vld [vmem:[#allocation2 + $0x48] sm:$0xff]
    %v368 = vld [vmem:[#allocation2 + $0x50] sm:$0xff]
    %v369 = vld [vmem:[#allocation2 + $0x58] sm:$0xff]
    %v370 = vld [vmem:[#allocation2 + $0x60] sm:$0xff]
    %v371 = vld [vmem:[#allocation2 + $0x68] sm:$0xff]
    %v372 = vld [vmem:[#allocation2 + $0x70] sm:$0xff]
    %v373 = vld [vmem:[#allocation2 + $0x78] sm:$0xff]
    %v374 = vld [vmem:[#allocation2 + $0x80] sm:$0xff]
    %v375 = vld [vmem:[#allocation2 + $0x88] sm:$0xff]
    %v376 = vld [vmem:[#allocation2 + $0x90] sm:$0xff]
    %v377 = vld [vmem:[#allocation2 + $0x98] sm:$0xff]
    %v378 = vld [vmem:[#allocation2 + $0xa0] sm:$0xff]
    %v379 = vld [vmem:[#allocation2 + $0xa8] sm:$0xff]
    %v380 = vld [vmem:[#allocation2 + $0xb0] sm:$0xff]
    %v381 = vld [vmem:[#allocation2 + $0xb8] sm:$0xff]
    %v382 = vld [vmem:[#allocation2 + $0xc0] sm:$0xff]
    %v383 = vld [vmem:[#allocation2 + $0xc8] sm:$0xff]
    %v384 = vld [vmem:[#allocation2 + $0xd0] sm:$0xff]
    %v385 = vld [vmem:[#allocation2 + $0xd8] sm:$0xff]
    %v386 = vld [vmem:[#allocation2 + $0xe0] sm:$0xff]
    %v387 = vld [vmem:[#allocation2 + $0xe8] sm:$0xff]
    %v388 = vld [vmem:[#allocation2 + $0xf0] sm:$0xff]
    %v389 = vld [vmem:[#allocation2 + $0xf8] sm:$0xff]
    %v390 = vld [vmem:[#allocation2 + $0x100] sm:$0xff]
    %v391 = vld [vmem:[#allocation2 + $0x108] sm:$0xff]
    %v392 = vld [vmem:[#allocation2 + $0x110] sm:$0xff]
    %v393 = vld [vmem:[#allocation2 + $0x118] sm:$0xff]
    %v394 = vld [vmem:[#allocation2 + $0x120] sm:$0xff]
    %v395 = vld [vmem:[#allocation2 + $0x128] sm:$0xff]
    %v396 = vld [vmem:[#allocation2 + $0x130] sm:$0xff]
    %v397 = vld [vmem:[#allocation2 + $0x138] sm:$0xff]
    %v398 = vld [vmem:[#allocation2 + $0x140] sm:$0xff]
    %v399 = vld [vmem:[#allocation2 + $0x148] sm:$0xff]
    %v400 = vld [vmem:[#allocation2 + $0x150] sm:$0xff]
    %v401 = vld [vmem:[#allocation2 + $0x158] sm:$0xff]
    %v402 = vld [vmem:[#allocation2 + $0x160] sm:$0xff]
    %v403 = vld [vmem:[#allocation2 + $0x168] sm:$0xff]
    %v404 = vld [vmem:[#allocation2 + $0x170] sm:$0xff]
    %v405 = vld [vmem:[#allocation2 + $0x178] sm:$0xff]
    %v406 = vld [vmem:[#allocation2 + $0x180] sm:$0xff]
    %v407 = vld [vmem:[#allocation2 + $0x188] sm:$0xff]
    %v408 = vld [vmem:[#allocation2 + $0x190] sm:$0xff]
    %v409 = vld [vmem:[#allocation2 + $0x198] sm:$0xff]
    %v410 = vld [vmem:[#allocation2 + $0x1a0] sm:$0xff]
    %v411 = vld [vmem:[#allocation2 + $0x1a8] sm:$0xff]
    %v412 = vld [vmem:[#allocation2 + $0x1b0] sm:$0xff]
    %v413 = vld [vmem:[#allocation2 + $0x1b8] sm:$0xff]
    %v414 = vld [vmem:[#allocation2 + $0x1c0] sm:$0xff]
    %v415 = vld [vmem:[#allocation2 + $0x1c8] sm:$0xff]
    %v416 = vld [vmem:[#allocation2 + $0x1d0] sm:$0xff]
    %v417 = vld [vmem:[#allocation2 + $0x1d8] sm:$0xff]
    %v418 = vld [vmem:[#allocation2 + $0x1e0] sm:$0xff]
    %v419 = vld [vmem:[#allocation2 + $0x1e8] sm:$0xff]
    %v420 = vld [vmem:[#allocation2 + $0x1f0] sm:$0xff]
    %v421 = vld [vmem:[#allocation2 + $0x1f8] sm:$0xff]
    %v422 = vld [vmem:[%s4] sm:$0x1]
    %v424 = vlaneseq
    %v425 = vshrl.u32 %v424, 7
    %v426 = vsub.s32 0, %v425
    %v427 = vrot.slane %v422, %v426
    %429 = vmatprep.subr.mxu0 0.0
    %430 = vmatpush1.msra.mxu0 %v358
    %431 = vmatprep.subr.mxu0 0.0
    %432 = vmatpush1.msra.mxu0 %v359
    %433 = vmatprep.subr.mxu0 0.0
    %434 = vmatpush1.msra.mxu0 %v360
    %435 = vmatprep.subr.mxu0 0.0
    %436 = vmatpush1.msra.mxu0 %v361
    %437 = vmatprep.subr.mxu0 0.0
    %438 = vmatpush1.msra.mxu0 %v362
    %439 = vmatprep.subr.mxu0 0.0
    %440 = vmatpush1.msra.mxu0 %v363
    %441 = vmatprep.subr.mxu0 0.0
    %442 = vmatpush1.msra.mxu0 %v364
    %443 = vmatprep.subr.mxu0 0.0
    %444 = vmatpush1.msra.mxu0 %v365
    %445 = vmatprep.subr.mxu0 0.0
    %446 = vmatpush1.msra.mxu0 %v366
    %447 = vmatprep.subr.mxu0 0.0
    %448 = vmatpush1.msra.mxu0 %v367
    %449 = vmatprep.subr.mxu0 0.0
    %450 = vmatpush1.msra.mxu0 %v368
    %451 = vmatprep.subr.mxu0 0.0
    %452 = vmatpush1.msra.mxu0 %v369
    %453 = vmatprep.subr.mxu0 0.0
    %454 = vmatpush1.msra.mxu0 %v370
    %455 = vmatprep.subr.mxu0 0.0
    %456 = vmatpush1.msra.mxu0 %v371
    %457 = vmatprep.subr.mxu0 0.0
    %458 = vmatpush1.msra.mxu0 %v372
    %459 = vmatprep.subr.mxu0 0.0
    %460 = vmatpush1.msra.mxu0 %v373
    %461 = vmatprep.subr.mxu0 0.0
    %462 = vmatpush1.msra.mxu0 %v374
    %463 = vmatprep.subr.mxu0 0.0
    %464 = vmatpush1.msra.mxu0 %v375
    %465 = vmatprep.subr.mxu0 0.0
    %466 = vmatpush1.msra.mxu0 %v376
    %467 = vmatprep.subr.mxu0 0.0
    %468 = vmatpush1.msra.mxu0 %v377
    %469 = vmatprep.subr.mxu0 0.0
    %470 = vmatpush1.msra.mxu0 %v378
    %471 = vmatprep.subr.mxu0 0.0
    %472 = vmatpush1.msra.mxu0 %v379
    %473 = vmatprep.subr.mxu0 0.0
    %474 = vmatpush1.msra.mxu0 %v380
    %475 = vmatprep.subr.mxu0 0.0
    %476 = vmatpush1.msra.mxu0 %v381
    %477 = vmatprep.subr.mxu0 0.0
    %478 = vmatpush1.msra.mxu0 %v382
    %479 = vmatprep.subr.mxu0 0.0
    %480 = vmatpush1.msra.mxu0 %v383
    %481 = vmatprep.subr.mxu0 0.0
    %482 = vmatpush1.msra.mxu0 %v384
    %483 = vmatprep.subr.mxu0 0.0
    %484 = vmatpush1.msra.mxu0 %v385
    %485 = vmatprep.subr.mxu0 0.0
    %486 = vmatpush1.msra.mxu0 %v386
    %487 = vmatprep.subr.mxu0 0.0
    %488 = vmatpush1.msra.mxu0 %v387
    %489 = vmatprep.subr.mxu0 0.0
    %490 = vmatpush1.msra.mxu0 %v388
    %491 = vmatprep.subr.mxu0 0.0
    %492 = vmatpush1.msra.mxu0 %v389
    %493 = vmatprep.mubr.f32.mxu0 %v355
    %494 = vmatmul.mubr.f32.gmra.mrb[0].mxu0 %v354
    %v495 = vpop.f32.mrb[0].mxu0
    %v496 = vadd.f32 %v427, %v495
    %v497 = vpop.f32.mrb[0].mxu0
    %498 = vdwg.mxu0
    %499 = vmatprep.subr.mxu0 0.0
    %500 = vmatpush1.msra.mxu0 %v390
    %501 = vmatprep.subr.mxu0 0.0
    %502 = vmatpush1.msra.mxu0 %v391
    %503 = vmatprep.subr.mxu0 0.0
    %504 = vmatpush1.msra.mxu0 %v392
    %505 = vmatprep.subr.mxu0 0.0
    %506 = vmatpush1.msra.mxu0 %v393
    %507 = vmatprep.subr.mxu0 0.0
    %508 = vmatpush1.msra.mxu0 %v394
    %509 = vmatprep.subr.mxu0 0.0
    %510 = vmatpush1.msra.mxu0 %v395
    %511 = vmatprep.subr.mxu0 0.0
    %512 = vmatpush1.msra.mxu0 %v396
    %513 = vmatprep.subr.mxu0 0.0
    %514 = vmatpush1.msra.mxu0 %v397
    %515 = vmatprep.subr.mxu0 0.0
    %516 = vmatpush1.msra.mxu0 %v398
    %517 = vmatprep.subr.mxu0 0.0
    %518 = vmatpush1.msra.mxu0 %v399
    %519 = vmatprep.subr.mxu0 0.0
    %520 = vmatpush1.msra.mxu0 %v400
    %521 = vmatprep.subr.mxu0 0.0
    %522 = vmatpush1.msra.mxu0 %v401
    %523 = vmatprep.subr.mxu0 0.0
    %524 = vmatpush1.msra.mxu0 %v402
    %525 = vmatprep.subr.mxu0 0.0
    %526 = vmatpush1.msra.mxu0 %v403
    %527 = vmatprep.subr.mxu0 0.0
    %528 = vmatpush1.msra.mxu0 %v404
    %529 = vmatprep.subr.mxu0 0.0
    %530 = vmatpush1.msra.mxu0 %v405
    %531 = vmatprep.subr.mxu0 0.0
    %532 = vmatpush1.msra.mxu0 %v406
    %533 = vmatprep.subr.mxu0 0.0
    %534 = vmatpush1.msra.mxu0 %v407
    %535 = vmatprep.subr.mxu0 0.0
    %536 = vmatpush1.msra.mxu0 %v408
    %537 = vmatprep.subr.mxu0 0.0
    %538 = vmatpush1.msra.mxu0 %v409
    %539 = vmatprep.subr.mxu0 0.0
    %540 = vmatpush1.msra.mxu0 %v410
    %541 = vmatprep.subr.mxu0 0.0
    %542 = vmatpush1.msra.mxu0 %v411
    %543 = vmatprep.subr.mxu0 0.0
    %544 = vmatpush1.msra.mxu0 %v412
    %545 = vmatprep.subr.mxu0 0.0
    %546 = vmatpush1.msra.mxu0 %v413
    %547 = vmatprep.subr.mxu0 0.0
    %548 = vmatpush1.msra.mxu0 %v414
    %549 = vmatprep.subr.mxu0 0.0
    %550 = vmatpush1.msra.mxu0 %v415
    %551 = vmatprep.subr.mxu0 0.0
    %552 = vmatpush1.msra.mxu0 %v416
    %553 = vmatprep.subr.mxu0 0.0
    %554 = vmatpush1.msra.mxu0 %v417
    %555 = vmatprep.subr.mxu0 0.0
    %556 = vmatpush1.msra.mxu0 %v418
    %557 = vmatprep.subr.mxu0 0.0
    %558 = vmatpush1.msra.mxu0 %v419
    %559 = vmatprep.subr.mxu0 0.0
    %560 = vmatpush1.msra.mxu0 %v420
    %561 = vmatprep.subr.mxu0 0.0
    %562 = vmatpush1.msra.mxu0 %v421
    %563 = vmatprep.mubr.f32.mxu0 %v357
    %564 = vmatmul.mubr.f32.gmra.mrb[0].mxu0 %v356
    %v565 = vpop.f32.mrb[0].mxu0
    %v566 = vadd.f32 %v496, %v565
    %v567 = vpop.f32.mrb[0].mxu0
    %568 = vdwg.mxu0
    %569 = vst [vmem:[#allocation5] sm:$0xff] %v566
    // Predicated region
    $region26: #{tpu_custom_call.1} parent=1 // pred_check
      _
    $region27: #{tpu_custom_call.1} parent=1 // pred_check_branch
      %571 = sbr.rel (0) target = $region29
    $region28: #{tpu_custom_call.1} parent=1 // pred_region
      %s573 = ssub.s32 128, 128
      %574 = vsyncadd [#allocation4], %s573
      %s576 = sshll.u32 [#allocation5], 4
      %s577 = int_to_ptr.vmem [resolvable:$true] %s576
      %579 = dma.vmem_to_hbm [thread:$0]  %s577, 128, %s5, [#allocation4]
    $region29: #{tpu_custom_call.1} parent=1 // pred_fallthru
      _
    // Predicated region
    $region30: #{tpu_custom_call.1} parent=1 // pred_check
      _
    $region31: #{tpu_custom_call.1} parent=1 // pred_check_branch
      %581 = sbr.rel (0) target = $region33
    $region32: #{tpu_custom_call.1} parent=1 // pred_region
      %582 = dma.done [#allocation4], 128
    $region33: #{tpu_custom_call.1} parent=1 // pred_fallthru
      _
    %583 = vsyncpa [#allocation3], 1
    %584 = vsyncpa [#allocation4], 1

</llo_original>
